<compile_context>
chip_gen: v5e
topology: v5e:2x2
jax: 0.10.0
libtpu: 0.0.40
codegen_flags: <defaults>
</compile_context>

<pallas_src>
import jax
import jax.numpy as jnp
from jax.experimental import pallas as pl
from jax.experimental.pallas import tpu as pltpu

IN_FEATURES = 16
OUT_FEATURES = 4

PACK = 32                          # logical rows packed per vreg row (32*4 = 128 out lanes)
PACKED_IN = PACK * IN_FEATURES     # 512 input lanes per packed row
PACKED_OUT = PACK * OUT_FEATURES   # 128 output lanes per packed row
ROW_ALIGN = PACK * 8               # pad batch so packed rows are sublane (8) aligned
TILE_PACKED_ROWS = 256             # 256 packed rows = 8192 logical rows per grid step


def _round_up(n: int, m: int) -> int:
    return ((n + m - 1) // m) * m


def packed_linear_kernel(x_ref, w_ref, b_ref, o_ref):
    # x_ref: [TB, 512]   streamed batch tile (lane-dense)
    # w_ref: [512, 128]  resident block-diagonal kron(I_32, W^T)
    # b_ref: [1, 128]    resident packed bias
    # o_ref: [TB, 128]   lane-dense output tile (unmasked stores)
    y = jnp.dot(x_ref[...], w_ref[...], preferred_element_type=jnp.float32)
    o_ref[...] = (y + b_ref[...]).astype(o_ref.dtype)


def prepare_params(weight, bias):
    """One-time layout work (parameter-setup time, NOT per forward call).

    weight: [4, 16] (PyTorch nn.Linear layout), bias: [4].
    Returns ([512, 128] block-diagonal weight, [1, 128] packed bias).
    """
    wt = weight.astype(jnp.float32).T                              # [16, 4]
    w_block = jnp.kron(jnp.eye(PACK, dtype=jnp.float32), wt)       # [512, 128]
    b_packed = jnp.tile(bias.astype(jnp.float32), PACK).reshape(1, PACKED_OUT)
    return w_block, b_packed


@jax.jit
def qn_model_forward(x, w_block, b_packed):
    """y = x @ W^T + b for x: [B, 16] -> y: [B, 4] (packed lane-dense kernel)."""
    B = x.shape[0]
    # Pad batch to a multiple of PACK*8 so the packed view has sublane-aligned
    # rows.  When B is already aligned (typical large-batch inference) the
    # reshape is a zero-copy view; ragged last grid blocks are handled by
    # Pallas (out-of-range writes dropped, each row is independent).
    b_pad = _round_up(max(B, 1), ROW_ALIGN)
    if b_pad != B:
        x = jnp.pad(x, ((0, b_pad - B), (0, 0)))
    rows = b_pad // PACK                       # packed rows, multiple of 8
    xp = x.reshape(rows, PACKED_IN)            # free row-major reshape
    tb = min(TILE_PACKED_ROWS, rows)
    grid = (pl.cdiv(rows, tb),)

    out = pl.pallas_call(
        packed_linear_kernel,
        out_shape=jax.ShapeDtypeStruct((rows, PACKED_OUT), jnp.float32),
        grid=grid,
        in_specs=[
            pl.BlockSpec((tb, PACKED_IN), lambda i: (i, 0)),          # streamed
            pl.BlockSpec((PACKED_IN, PACKED_OUT), lambda i: (0, 0)),  # resident
            pl.BlockSpec((1, PACKED_OUT), lambda i: (0, 0)),          # resident
        ],
        out_specs=pl.BlockSpec((tb, PACKED_OUT), lambda i: (i, 0)),
        compiler_params=pltpu.CompilerParams(
            dimension_semantics=("parallel",),  # v7x: shard batch over 2 TCs
        ),
    )(xp, w_block, b_packed)

    return out.reshape(b_pad, OUT_FEATURES)[:B]


def qn_model_forward_small(x, weight, bias):
    """Tiny-batch path: for B of a few rows, plain fused XLA beats any
    custom kernel's launch/DMA overhead.  Kept as a dispatch target."""
    return x @ weight.T + bias


if __name__ == "__main__":
    key = jax.random.PRNGKey(0)
    kx, kw, kb, kx2 = jax.random.split(key, 4)

    # Deterministic parameters with nn.Linear(16, 4)'s init range:
    # U(-1/sqrt(fan_in), 1/sqrt(fan_in)).
    bound = 1.0 / jnp.sqrt(jnp.float32(IN_FEATURES))
    weight = jax.random.uniform(kw, (OUT_FEATURES, IN_FEATURES), jnp.float32,
                                -bound, bound)
    bias = jax.random.uniform(kb, (OUT_FEATURES,), jnp.float32, -bound, bound)

    # Layout work done once, outside the hot path.
    w_block, b_packed = prepare_params(weight, bias)

    # Small example consistent with the module (batch=2, features=16).
    B = 2
    x = jax.random.normal(kx, (B, IN_FEATURES), jnp.float32)
    out = jax.block_until_ready(qn_model_forward(x, w_block, b_packed))
    ref = x @ weight.T + bias
    assert out.shape == (B, OUT_FEATURES)
    assert jnp.allclose(out, ref, atol=1e-4, rtol=1e-4)

    # Larger batch exercising the multi-step grid, padding and ragged tile.
    B2 = 10000
    x2 = jax.random.normal(kx2, (B2, IN_FEATURES), jnp.float32)
    out2 = jax.block_until_ready(qn_model_forward(x2, w_block, b_packed))
    ref2 = x2 @ weight.T + bias
    assert out2.shape == (B2, OUT_FEATURES)
    assert jnp.allclose(out2, ref2, atol=1e-4, rtol=1e-4)

    print("KERNEL_OK")
</pallas_src>

<mosaic_0001>
module attributes {stable_mosaic.version = 11 : i64} {
  func.func @packed_linear_kernel(%arg0: i32, %arg1: memref<8x512xf32, #tpu.memory_space<vmem>>, %arg2: memref<512x128xf32, #tpu.memory_space<vmem>>, %arg3: memref<1x128xf32, #tpu.memory_space<vmem>>, %arg4: memref<8x128xf32, #tpu.memory_space<vmem>>) attributes {dimension_semantics = [#tpu.dimension_semantics<parallel>], iteration_bounds = array<i64: 1>, scalar_prefetch = 0 : i64, scratch_operands = 0 : i64, tpu.core_type = #tpu.core_type<tc>, window_params = [{transform_indices = @transform_0, window_bounds = array<i64: 8, 512>}, {pipeline_mode = #tpu.pipeline_mode<synchronous>, transform_indices = @transform_1, window_bounds = array<i64: 512, 128>}, {pipeline_mode = #tpu.pipeline_mode<synchronous>, transform_indices = @transform_2, window_bounds = array<i64: 1, 128>}, {transform_indices = @transform_3, window_bounds = array<i64: 8, 128>}]} {
    %c0 = arith.constant 0 : index
    %c0_0 = arith.constant 0 : index
    %0 = vector.load %arg1[%c0, %c0_0] : memref<8x512xf32, #tpu.memory_space<vmem>>, vector<8x512xf32>
    %c0_1 = arith.constant 0 : index
    %c0_2 = arith.constant 0 : index
    %1 = vector.load %arg2[%c0_1, %c0_2] : memref<512x128xf32, #tpu.memory_space<vmem>>, vector<512x128xf32>
    %cst = arith.constant dense<0.000000e+00> : vector<8x128xf32>
    %2 = tpu.matmul %0, %1, %cst {dimension_numbers = #tpu.dot_dimension_numbers<[1], [0], [0], [1], [0, 0, 1, 1], [], []>} : vector<8x512xf32>, vector<512x128xf32>, vector<8x128xf32> -> vector<8x128xf32>
    %c0_3 = arith.constant 0 : index
    %c0_4 = arith.constant 0 : index
    %3 = vector.load %arg3[%c0_3, %c0_4] : memref<1x128xf32, #tpu.memory_space<vmem>>, vector<1x128xf32>
    %4 = vector.broadcast %3 : vector<1x128xf32> to vector<8x128xf32>
    %5 = arith.addf %2, %4 : vector<8x128xf32>
    %c0_5 = arith.constant 0 : index
    %c0_6 = arith.constant 0 : index
    %6 = vector.load %arg4[%c0_5, %c0_6] : memref<8x128xf32, #tpu.memory_space<vmem>>, vector<8x128xf32>
    tpu.vector_store %arg4[%c0_5, %c0_6], %5 {strides = array<i32>} : memref<8x128xf32, #tpu.memory_space<vmem>>, vector<8x128xf32>,
    return
  }
  func.func @transform_0(%arg0: i32) -> (i32, i32) {
    %c0_i32 = arith.constant 0 : i32
    %c0_i32_0 = arith.constant 0 : i32
    return %arg0, %c0_i32 : i32, i32
  }
  func.func @transform_1(%arg0: i32) -> (i32, i32) {
    %c0_i32 = arith.constant 0 : i32
    %c0_i32_0 = arith.constant 0 : i32
    %c0_i32_1 = arith.constant 0 : i32
    return %c0_i32, %c0_i32_0 : i32, i32
  }
  func.func @transform_2(%arg0: i32) -> (i32, i32) {
    %c0_i32 = arith.constant 0 : i32
    %c0_i32_0 = arith.constant 0 : i32
    %c0_i32_1 = arith.constant 0 : i32
    return %c0_i32, %c0_i32_0 : i32, i32
  }
  func.func @transform_3(%arg0: i32) -> (i32, i32) {
    %c0_i32 = arith.constant 0 : i32
    %c0_i32_0 = arith.constant 0 : i32
    return %arg0, %c0_i32 : i32, i32
  }
}

</mosaic_0001>

<llo_original>
// kernel: qn_model_forward.1
$region0: #{qn_model_forward.1}
  #allocation0 [shape = 'u32[]', space=smem, size = 0x4, offset = 0x4, fixed_abs, tag = 'smem constant byte address 0x4 - core index']
  #allocation1 [shape = 'u32[72,128]{1,0:T(1,128)}', space=vmem, size = 0x9000, scoped, tag = 'internal scratch']
  %s0 = inlined_call_operand.vmem [shape: f32[8,512], index: 0, kind: input, shape index: {}]
  %s1 = inlined_call_operand.vmem [shape: f32[512,128], index: 1, kind: input, shape index: {}]
  %s2 = inlined_call_operand.vmem [shape: f32[1,128], index: 2, kind: input, shape index: {}]
  %s3 = inlined_call_operand.vmem [shape: f32[8,128], index: 3, kind: output, shape index: {}]
  %s4 = sld [smem:[#allocation0]]
  $region22: #{qn_model_forward.1} parent=0
    _
  %s6 = ssub.s32 1, %s4
  %s7 = scalar_select 0, %s6, %s4
  // Predicated region
  $region2: #{qn_model_forward.1} parent=0 // pred_check
    _
  $region3: #{qn_model_forward.1} parent=0 // pred_check_branch
    %9 = sbr.rel (0) target = $region5
  $region4: #{qn_model_forward.1} parent=0 // pred_region
    _
  $region5: #{qn_model_forward.1} parent=0 // pred_fallthru
    _
  // Predicated region
  $region6: #{qn_model_forward.1} parent=0 // pred_check
    _
  $region7: #{qn_model_forward.1} parent=0 // pred_check_branch
    %11 = sbr.rel (0) target = $region9
  $region8: #{qn_model_forward.1} parent=0 // pred_region
    _
  $region9: #{qn_model_forward.1} parent=0 // pred_fallthru
    _
  // Predicated region
  $region10: #{qn_model_forward.1} parent=0 // pred_check
    _
  $region11: #{qn_model_forward.1} parent=0 // pred_check_branch
    %13 = sbr.rel (0) target = $region13
  $region12: #{qn_model_forward.1} parent=0 // pred_region
    _
  $region13: #{qn_model_forward.1} parent=0 // pred_fallthru
    _
  %v14 = vld [vmem:[%s0] sm:$0xff]
  %v15 = vld [vmem:[%s0 + $0x8] sm:$0xff]
  %v16 = vld [vmem:[%s0 + $0x10] sm:$0xff]
  %v17 = vld [vmem:[%s0 + $0x18] sm:$0xff]
  %v18 = vld [vmem:[%s1] sm:$0xff]
  %v19 = vld [vmem:[%s1 + $0x8] sm:$0xff]
  %v20 = vld [vmem:[%s1 + $0x10] sm:$0xff]
  %v21 = vld [vmem:[%s1 + $0x18] sm:$0xff]
  %v22 = vld [vmem:[%s1 + $0x20] sm:$0xff]
  %v23 = vld [vmem:[%s1 + $0x28] sm:$0xff]
  %v24 = vld [vmem:[%s1 + $0x30] sm:$0xff]
  %v25 = vld [vmem:[%s1 + $0x38] sm:$0xff]
  %v26 = vld [vmem:[%s1 + $0x40] sm:$0xff]
  %v27 = vld [vmem:[%s1 + $0x48] sm:$0xff]
  %v28 = vld [vmem:[%s1 + $0x50] sm:$0xff]
  %v29 = vld [vmem:[%s1 + $0x58] sm:$0xff]
  %v30 = vld [vmem:[%s1 + $0x60] sm:$0xff]
  %v31 = vld [vmem:[%s1 + $0x68] sm:$0xff]
  %v32 = vld [vmem:[%s1 + $0x70] sm:$0xff]
  %v33 = vld [vmem:[%s1 + $0x78] sm:$0xff]
  %v34 = vld [vmem:[%s1 + $0x80] sm:$0xff]
  %v35 = vld [vmem:[%s1 + $0x88] sm:$0xff]
  %v36 = vld [vmem:[%s1 + $0x90] sm:$0xff]
  %v37 = vld [vmem:[%s1 + $0x98] sm:$0xff]
  %v38 = vld [vmem:[%s1 + $0xa0] sm:$0xff]
  %v39 = vld [vmem:[%s1 + $0xa8] sm:$0xff]
  %v40 = vld [vmem:[%s1 + $0xb0] sm:$0xff]
  %v41 = vld [vmem:[%s1 + $0xb8] sm:$0xff]
  %v42 = vld [vmem:[%s1 + $0xc0] sm:$0xff]
  %v43 = vld [vmem:[%s1 + $0xc8] sm:$0xff]
  %v44 = vld [vmem:[%s1 + $0xd0] sm:$0xff]
  %v45 = vld [vmem:[%s1 + $0xd8] sm:$0xff]
  %v46 = vld [vmem:[%s1 + $0xe0] sm:$0xff]
  %v47 = vld [vmem:[%s1 + $0xe8] sm:$0xff]
  %v48 = vld [vmem:[%s1 + $0xf0] sm:$0xff]
  %v49 = vld [vmem:[%s1 + $0xf8] sm:$0xff]
  %v50 = vld [vmem:[%s1 + $0x100] sm:$0xff]
  %v51 = vld [vmem:[%s1 + $0x108] sm:$0xff]
  %v52 = vld [vmem:[%s1 + $0x110] sm:$0xff]
  %v53 = vld [vmem:[%s1 + $0x118] sm:$0xff]
  %v54 = vld [vmem:[%s1 + $0x120] sm:$0xff]
  %v55 = vld [vmem:[%s1 + $0x128] sm:$0xff]
  %v56 = vld [vmem:[%s1 + $0x130] sm:$0xff]
  %v57 = vld [vmem:[%s1 + $0x138] sm:$0xff]
  %v58 = vld [vmem:[%s1 + $0x140] sm:$0xff]
  %v59 = vld [vmem:[%s1 + $0x148] sm:$0xff]
  %v60 = vld [vmem:[%s1 + $0x150] sm:$0xff]
  %v61 = vld [vmem:[%s1 + $0x158] sm:$0xff]
  %v62 = vld [vmem:[%s1 + $0x160] sm:$0xff]
  %v63 = vld [vmem:[%s1 + $0x168] sm:$0xff]
  %v64 = vld [vmem:[%s1 + $0x170] sm:$0xff]
  %v65 = vld [vmem:[%s1 + $0x178] sm:$0xff]
  %v66 = vld [vmem:[%s1 + $0x180] sm:$0xff]
  %v67 = vld [vmem:[%s1 + $0x188] sm:$0xff]
  %v68 = vld [vmem:[%s1 + $0x190] sm:$0xff]
  %v69 = vld [vmem:[%s1 + $0x198] sm:$0xff]
  %v70 = vld [vmem:[%s1 + $0x1a0] sm:$0xff]
  %v71 = vld [vmem:[%s1 + $0x1a8] sm:$0xff]
  %v72 = vld [vmem:[%s1 + $0x1b0] sm:$0xff]
  %v73 = vld [vmem:[%s1 + $0x1b8] sm:$0xff]
  %v74 = vld [vmem:[%s1 + $0x1c0] sm:$0xff]
  %v75 = vld [vmem:[%s1 + $0x1c8] sm:$0xff]
  %v76 = vld [vmem:[%s1 + $0x1d0] sm:$0xff]
  %v77 = vld [vmem:[%s1 + $0x1d8] sm:$0xff]
  %v78 = vld [vmem:[%s1 + $0x1e0] sm:$0xff]
  %v79 = vld [vmem:[%s1 + $0x1e8] sm:$0xff]
  %v80 = vld [vmem:[%s1 + $0x1f0] sm:$0xff]
  %v81 = vld [vmem:[%s1 + $0x1f8] sm:$0xff]
  %v82 = vld [vmem:[%s2] sm:$0x1]
  %v84 = vperm.slane %v82, 0
  %86 = vmatpush.msra.mxu0 %v33
  %87 = vmatpush.msra.mxu0 %v32
  %88 = vmatpush.msra.mxu0 %v31
  %89 = vmatpush.msra.mxu0 %v30
  %90 = vmatpush.msra.mxu0 %v29
  %91 = vmatpush.msra.mxu0 %v28
  %92 = vmatpush.msra.mxu0 %v27
  %93 = vmatpush.msra.mxu0 %v26
  %94 = vmatpush.msra.mxu0 %v25
  %95 = vmatpush.msra.mxu0 %v24
  %96 = vmatpush.msra.mxu0 %v23
  %97 = vmatpush.msra.mxu0 %v22
  %98 = vmatpush.msra.mxu0 %v21
  %99 = vmatpush.msra.mxu0 %v20
  %100 = vmatpush.msra.mxu0 %v19
  %101 = vmatpush.msra.mxu0 %v18
  %102 = vmatmul.f32.gmra.mxu0 %v14
  %v103 = vpop.f32.mrf.mxu0
  %v104 = vadd.f32 %v84, %v103
  %105 = vdwg.mxu0
  %106 = vmatpush.msra.mxu0 %v49
  %107 = vmatpush.msra.mxu0 %v48
  %108 = vmatpush.msra.mxu0 %v47
  %109 = vmatpush.msra.mxu0 %v46
  %110 = vmatpush.msra.mxu0 %v45
  %111 = vmatpush.msra.mxu0 %v44
  %112 = vmatpush.msra.mxu0 %v43
  %113 = vmatpush.msra.mxu0 %v42
  %114 = vmatpush.msra.mxu0 %v41
  %115 = vmatpush.msra.mxu0 %v40
  %116 = vmatpush.msra.mxu0 %v39
  %117 = vmatpush.msra.mxu0 %v38
  %118 = vmatpush.msra.mxu0 %v37
  %119 = vmatpush.msra.mxu0 %v36
  %120 = vmatpush.msra.mxu0 %v35
  %121 = vmatpush.msra.mxu0 %v34
  %122 = vmatmul.f32.gmra.mxu0 %v15
  %v123 = vpop.f32.mrf.mxu0
  %v124 = vadd.f32 %v104, %v123
  %125 = vdwg.mxu0
  %126 = vmatpush.msra.mxu0 %v65
  %127 = vmatpush.msra.mxu0 %v64
  %128 = vmatpush.msra.mxu0 %v63
  %129 = vmatpush.msra.mxu0 %v62
  %130 = vmatpush.msra.mxu0 %v61
  %131 = vmatpush.msra.mxu0 %v60
  %132 = vmatpush.msra.mxu0 %v59
  %133 = vmatpush.msra.mxu0 %v58
  %134 = vmatpush.msra.mxu0 %v57
  %135 = vmatpush.msra.mxu0 %v56
  %136 = vmatpush.msra.mxu0 %v55
  %137 = vmatpush.msra.mxu0 %v54
  %138 = vmatpush.msra.mxu0 %v53
  %139 = vmatpush.msra.mxu0 %v52
  %140 = vmatpush.msra.mxu0 %v51
  %141 = vmatpush.msra.mxu0 %v50
  %142 = vmatmul.f32.gmra.mxu0 %v16
  %v143 = vpop.f32.mrf.mxu0
  %v144 = vadd.f32 %v124, %v143
  %145 = vdwg.mxu0
  %146 = vmatpush.msra.mxu0 %v81
  %147 = vmatpush.msra.mxu0 %v80
  %148 = vmatpush.msra.mxu0 %v79
  %149 = vmatpush.msra.mxu0 %v78
  %150 = vmatpush.msra.mxu0 %v77
  %151 = vmatpush.msra.mxu0 %v76
  %152 = vmatpush.msra.mxu0 %v75
  %153 = vmatpush.msra.mxu0 %v74
  %154 = vmatpush.msra.mxu0 %v73
  %155 = vmatpush.msra.mxu0 %v72
  %156 = vmatpush.msra.mxu0 %v71
  %157 = vmatpush.msra.mxu0 %v70
  %158 = vmatpush.msra.mxu0 %v69
  %159 = vmatpush.msra.mxu0 %v68
  %160 = vmatpush.msra.mxu0 %v67
  %161 = vmatpush.msra.mxu0 %v66
  %162 = vmatmul.f32.gmra.mxu0 %v17
  %v163 = vpop.f32.mrf.mxu0
  %v164 = vadd.f32 %v144, %v163
  %165 = vdwg.mxu0
  %166 = vst [vmem:[%s3] sm:$0xff] %v164
  // Predicated region
  $region14: #{qn_model_forward.1} parent=0 // pred_check
    _
  $region15: #{qn_model_forward.1} parent=0 // pred_check_branch
    %168 = sbr.rel (0) target = $region17
  $region16: #{qn_model_forward.1} parent=0 // pred_region
    _
  $region17: #{qn_model_forward.1} parent=0 // pred_fallthru
    _
  // Predicated region
  $region18: #{qn_model_forward.1} parent=0 // pred_check
    _
  $region19: #{qn_model_forward.1} parent=0 // pred_check_branch
    %170 = sbr.rel (0) target = $region21
  $region20: #{qn_model_forward.1} parent=0 // pred_region
    _
  $region21: #{qn_model_forward.1} parent=0 // pred_fallthru
    _

</llo_original>
